<compile_context>
chip_gen: v5e
topology: v5e:2x2
jax: 0.10.0
libtpu: 0.0.40
codegen_flags: <defaults>
</compile_context>

<pallas_src>
import functools

import jax
import jax.numpy as jnp
from jax.experimental import pallas as pl
from jax.experimental.pallas import tpu as pltpu

_LANES = 128
_SUBLANES = 8


def _round_up(x, m):
    return ((x + m - 1) // m) * m


def mlp_kernel(x_ref, w1_ref, b1_ref, w2_ref, b2_ref, o_ref):
    """Fused 2-layer MLP on one batch tile: out = relu(x @ W1 + b1) @ W2 + b2.

    x arrives as f32 and is cast to bf16 on the VPU (hidden under the MXU);
    both matmuls accumulate in f32 on the MXU; bias + ReLU run in f32 on the
    VPU; the store is bf16 and lane-dense (action dim padded to 128).
    """
    x = x_ref[...].astype(jnp.bfloat16)                    # (TN, D_in) f32 -> bf16
    h = jnp.dot(x, w1_ref[...], preferred_element_type=jnp.float32)
    h = jnp.maximum(h + b1_ref[...], 0.0)                  # bias + ReLU (f32)
    y = jnp.dot(h.astype(jnp.bfloat16), w2_ref[...],
                preferred_element_type=jnp.float32)
    y = y + b2_ref[...]
    o_ref[...] = y.astype(o_ref.dtype)                     # bf16, (TN, A_pad)


def prepare_mlp_params(w1, b1, w2, b2):
    """One-time parameter prep (call OUTSIDE the per-step jit).

    w1: (D_in, H) f32, b1: (H,), w2: (H, A) f32, b2: (A,).
    Returns bf16 W1, f32 row-bias b1, and W2/b2 zero-padded on the action dim
    to a lane-dense multiple of 128 (bf16 / f32).
    """
    hidden = w1.shape[1]
    action_size = w2.shape[1]
    a_pad = _round_up(action_size, _LANES)
    w1_bf = w1.astype(jnp.bfloat16)
    b1_2d = b1.reshape(1, -1).astype(jnp.float32)
    w2_p = jnp.zeros((hidden, a_pad), jnp.bfloat16).at[:, :action_size].set(
        w2.astype(jnp.bfloat16))
    b2_p = jnp.zeros((1, a_pad), jnp.float32).at[:, :action_size].set(
        b2.reshape(1, -1).astype(jnp.float32))
    return w1_bf, b1_2d, w2_p, b2_p


@functools.partial(jax.jit, static_argnames=("action_size", "tile_n"))
def mlp_forward(x_nchw, w1_bf, b1_2d, w2_p, b2_p, *, action_size, tile_n=256):
    """x_nchw: (N, C, H, W) f32; prepared params from prepare_mlp_params.

    Returns (N, action_size) f32.  tile_n: 256 for v6e/v7x, 128 for v5e.
    """
    n = x_nchw.shape[0]
    d_in, hidden = w1_bf.shape
    a_pad = w2_p.shape[1]

    # Flatten exactly like torch.flatten(x, 1).  This reshape is layout-free;
    # x stays f32 (no extra HBM pass) and is cast to bf16 inside the kernel.
    x2d = x_nchw.reshape(n, -1)
    assert x2d.shape[1] == d_in

    # Batch tiling: sublane-align tiny batches (8 rows for f32 input), cap at
    # tile_n, and let Pallas mask the trailing partial tile (no jnp.pad copy).
    tn = min(tile_n, _round_up(n, _SUBLANES))
    grid = (pl.cdiv(n, tn),)

    cost = pl.CostEstimate(
        flops=2 * n * (d_in * hidden + hidden * a_pad),
        transcendentals=0,
        bytes_accessed=(x2d.size * 4            # f32 activations in
                        + w1_bf.size * 2 + w2_p.size * 2
                        + b1_2d.size * 4 + b2_p.size * 4
                        + n * a_pad * 2),       # bf16 output
    )

    out_padded = pl.pallas_call(
        mlp_kernel,
        out_shape=jax.ShapeDtypeStruct((n, a_pad), jnp.bfloat16),
        grid_spec=pl.GridSpec(
            grid=grid,
            in_specs=[
                # Activations: one batch tile per grid step (double-buffered,
                # overlaps MXU compute).
                pl.BlockSpec((tn, d_in), lambda i: (i, 0)),
                # Weights / biases: constant block index -> VMEM-resident
                # across all batch tiles (single logical DMA each).
                pl.BlockSpec((d_in, hidden), lambda i: (0, 0)),
                pl.BlockSpec((1, hidden), lambda i: (0, 0)),
                pl.BlockSpec((hidden, a_pad), lambda i: (0, 0)),
                pl.BlockSpec((1, a_pad), lambda i: (0, 0)),
            ],
            out_specs=pl.BlockSpec((tn, a_pad), lambda i: (i, 0)),
        ),
        compiler_params=pltpu.CompilerParams(
            # Batch tiles are independent -> parallel (engages both TCs on
            # v7x once the grid has >= 2 steps; a (1,)-grid small batch runs
            # on one core, which is fine: it is weight-DMA bound there).
            dimension_semantics=("parallel",)),
        cost_estimate=cost,
    )(x2d, w1_bf, b1_2d, w2_p, b2_p)

    # Slice off the lane padding and restore f32 for the caller (touches only
    # N x action_size elements -> essentially free).
    return out_padded[:, :action_size].astype(jnp.float32)


def _ref_forward_bf16(x_nchw, w1, b1, w2, b2):
    """Pure-JAX reference with the same bf16-in / f32-acc / bf16-out numerics."""
    x2d = x_nchw.reshape(x_nchw.shape[0], -1).astype(jnp.bfloat16)
    h = jnp.dot(x2d, w1.astype(jnp.bfloat16),
                preferred_element_type=jnp.float32) + b1
    h = jnp.maximum(h, 0.0)
    y = jnp.dot(h.astype(jnp.bfloat16), w2.astype(jnp.bfloat16),
                preferred_element_type=jnp.float32) + b2
    return y.astype(jnp.bfloat16).astype(jnp.float32)


def _ref_forward_f32(x_nchw, w1, b1, w2, b2):
    """Full-precision reference (loose-tolerance sanity check)."""
    x2d = x_nchw.reshape(x_nchw.shape[0], -1)
    h = jnp.maximum(x2d @ w1 + b1, 0.0)
    return h @ w2 + b2


if __name__ == "__main__":
    # Small shapes consistent with the module's docstring:
    # image input (channels=4, height=16, width=16), batch=2,
    # hidden_size=256 (default), action_size=8.
    batch, C, H, W = 2, 4, 16, 16
    input_size = C * H * W          # 1024
    hidden_size = 256
    action_size = 8

    key = jax.random.PRNGKey(0)
    kx, k1, k2, k3, k4 = jax.random.split(key, 5)

    x = jax.random.normal(kx, (batch, C, H, W), dtype=jnp.float32)

    # Deterministic parameter init (uniform, torch-Linear-like scale).
    lim1 = 1.0 / jnp.sqrt(jnp.float32(input_size))
    lim2 = 1.0 / jnp.sqrt(jnp.float32(hidden_size))
    w1 = jax.random.uniform(k1, (input_size, hidden_size), jnp.float32,
                            -lim1, lim1)
    b1 = jax.random.uniform(k2, (hidden_size,), jnp.float32, -lim1, lim1)
    w2 = jax.random.uniform(k3, (hidden_size, action_size), jnp.float32,
                            -lim2, lim2)
    b2 = jax.random.uniform(k4, (action_size,), jnp.float32, -lim2, lim2)

    # One-time weight prep (outside the step), then the fused kernel.
    w1_bf, b1_2d, w2_p, b2_p = prepare_mlp_params(w1, b1, w2, b2)
    out = mlp_forward(x, w1_bf, b1_2d, w2_p, b2_p, action_size=action_size)
    out = jax.block_until_ready(out)
    assert out.shape == (batch, action_size)

    # Check against a reference with matching bf16-consistent numerics.
    ref_bf = _ref_forward_bf16(x, w1, b1, w2, b2)
    assert jnp.allclose(out, ref_bf, atol=1e-2, rtol=1e-2), \
        "mismatch vs bf16-consistent reference"

    # Loose check against the full-f32 reference (bf16 weight/activation cast).
    ref_f32 = _ref_forward_f32(x, w1, b1, w2, b2)
    assert jnp.allclose(out, ref_f32, atol=5e-2, rtol=5e-2), \
        "mismatch vs f32 reference"

    print("KERNEL_OK")
</pallas_src>

<mosaic_0001>
module attributes {stable_mosaic.version = 11 : i64} {
  func.func @mlp_kernel(%arg0: i32, %arg1: memref<8x1024xf32, #tpu.memory_space<vmem>>, %arg2: memref<1024x256xbf16, #tpu.memory_space<vmem>>, %arg3: memref<1x256xf32, #tpu.memory_space<vmem>>, %arg4: memref<256x128xbf16, #tpu.memory_space<vmem>>, %arg5: memref<1x128xf32, #tpu.memory_space<vmem>>, %arg6: memref<8x128xbf16, #tpu.memory_space<vmem>>) attributes {dimension_semantics = [#tpu.dimension_semantics<parallel>], iteration_bounds = array<i64: 1>, scalar_prefetch = 0 : i64, scratch_operands = 0 : i64, tpu.core_type = #tpu.core_type<tc>, window_params = [{transform_indices = @transform_0, window_bounds = array<i64: 8, 1024>}, {pipeline_mode = #tpu.pipeline_mode<synchronous>, transform_indices = @transform_1, window_bounds = array<i64: 1024, 256>}, {pipeline_mode = #tpu.pipeline_mode<synchronous>, transform_indices = @transform_2, window_bounds = array<i64: 1, 256>}, {pipeline_mode = #tpu.pipeline_mode<synchronous>, transform_indices = @transform_3, window_bounds = array<i64: 256, 128>}, {pipeline_mode = #tpu.pipeline_mode<synchronous>, transform_indices = @transform_4, window_bounds = array<i64: 1, 128>}, {transform_indices = @transform_5, window_bounds = array<i64: 8, 128>}]} {
    %c0 = arith.constant 0 : index
    %c0_0 = arith.constant 0 : index
    %0 = vector.load %arg1[%c0, %c0_0] : memref<8x1024xf32, #tpu.memory_space<vmem>>, vector<8x1024xf32>
    %1 = arith.truncf %0 : vector<8x1024xf32> to vector<8x1024xbf16>
    %c0_1 = arith.constant 0 : index
    %c0_2 = arith.constant 0 : index
    %2 = vector.load %arg2[%c0_1, %c0_2] : memref<1024x256xbf16, #tpu.memory_space<vmem>>, vector<1024x256xbf16>
    %cst = arith.constant dense<0.000000e+00> : vector<8x256xf32>
    %3 = tpu.matmul %1, %2, %cst {dimension_numbers = #tpu.dot_dimension_numbers<[1], [0], [0], [1], [0, 0, 1, 1], [], []>} : vector<8x1024xbf16>, vector<1024x256xbf16>, vector<8x256xf32> -> vector<8x256xf32>
    %c0_3 = arith.constant 0 : index
    %c0_4 = arith.constant 0 : index
    %4 = vector.load %arg3[%c0_3, %c0_4] : memref<1x256xf32, #tpu.memory_space<vmem>>, vector<1x256xf32>
    %5 = vector.broadcast %4 : vector<1x256xf32> to vector<8x256xf32>
    %6 = arith.addf %3, %5 : vector<8x256xf32>
    %cst_5 = arith.constant 0.000000e+00 : f32
    %7 = vector.broadcast %cst_5 : f32 to vector<8x256xf32>
    %8 = arith.maximumf %6, %7 : vector<8x256xf32>
    %9 = arith.truncf %8 : vector<8x256xf32> to vector<8x256xbf16>
    %c0_6 = arith.constant 0 : index
    %c0_7 = arith.constant 0 : index
    %10 = vector.load %arg4[%c0_6, %c0_7] : memref<256x128xbf16, #tpu.memory_space<vmem>>, vector<256x128xbf16>
    %cst_8 = arith.constant dense<0.000000e+00> : vector<8x128xf32>
    %11 = tpu.matmul %9, %10, %cst_8 {dimension_numbers = #tpu.dot_dimension_numbers<[1], [0], [0], [1], [0, 0, 1, 1], [], []>} : vector<8x256xbf16>, vector<256x128xbf16>, vector<8x128xf32> -> vector<8x128xf32>
    %c0_9 = arith.constant 0 : index
    %c0_10 = arith.constant 0 : index
    %12 = vector.load %arg5[%c0_9, %c0_10] : memref<1x128xf32, #tpu.memory_space<vmem>>, vector<1x128xf32>
    %13 = vector.broadcast %12 : vector<1x128xf32> to vector<8x128xf32>
    %14 = arith.addf %11, %13 : vector<8x128xf32>
    %15 = arith.truncf %14 : vector<8x128xf32> to vector<8x128xbf16>
    %c0_11 = arith.constant 0 : index
    %c0_12 = arith.constant 0 : index
    %16 = vector.load %arg6[%c0_11, %c0_12] : memref<8x128xbf16, #tpu.memory_space<vmem>>, vector<8x128xbf16>
    tpu.vector_store %arg6[%c0_11, %c0_12], %15 {strides = array<i32>} : memref<8x128xbf16, #tpu.memory_space<vmem>>, vector<8x128xbf16>,
    return
  }
  func.func @transform_0(%arg0: i32) -> (i32, i32) {
    %c0_i32 = arith.constant 0 : i32
    %c0_i32_0 = arith.constant 0 : i32
    return %arg0, %c0_i32 : i32, i32
  }
  func.func @transform_1(%arg0: i32) -> (i32, i32) {
    %c0_i32 = arith.constant 0 : i32
    %c0_i32_0 = arith.constant 0 : i32
    %c0_i32_1 = arith.constant 0 : i32
    return %c0_i32, %c0_i32_0 : i32, i32
  }
  func.func @transform_2(%arg0: i32) -> (i32, i32) {
    %c0_i32 = arith.constant 0 : i32
    %c0_i32_0 = arith.constant 0 : i32
    %c0_i32_1 = arith.constant 0 : i32
    return %c0_i32, %c0_i32_0 : i32, i32
  }
  func.func @transform_3(%arg0: i32) -> (i32, i32) {
    %c0_i32 = arith.constant 0 : i32
    %c0_i32_0 = arith.constant 0 : i32
    %c0_i32_1 = arith.constant 0 : i32
    return %c0_i32, %c0_i32_0 : i32, i32
  }
  func.func @transform_4(%arg0: i32) -> (i32, i32) {
    %c0_i32 = arith.constant 0 : i32
    %c0_i32_0 = arith.constant 0 : i32
    %c0_i32_1 = arith.constant 0 : i32
    return %c0_i32, %c0_i32_0 : i32, i32
  }
  func.func @transform_5(%arg0: i32) -> (i32, i32) {
    %c0_i32 = arith.constant 0 : i32
    %c0_i32_0 = arith.constant 0 : i32
    return %arg0, %c0_i32 : i32, i32
  }
}

</mosaic_0001>

<llo_original>
// kernel: mlp_forward.1
$region0: #{mlp_forward.1}
  #allocation0 [shape = 'u32[]', space=smem, size = 0x4, offset = 0x4, fixed_abs, tag = 'smem constant byte address 0x4 - core index']
  #allocation1 [shape = 'u32[72,128]{1,0:T(1,128)}', space=vmem, size = 0x9000, scoped, tag = 'internal scratch']
  %s0 = inlined_call_operand.vmem [shape: f32[2,1024], index: 0, kind: input, shape index: {}]
  %s1 = inlined_call_operand.hbm [shape: bf16[1024,256], index: 1, kind: input, shape index: {}]
  %s2 = inlined_call_operand.vmem [shape: f32[1,256], index: 2, kind: input, shape index: {}]
  %s3 = inlined_call_operand.vmem [shape: bf16[256,128], index: 3, kind: input, shape index: {}]
  %s4 = inlined_call_operand.vmem [shape: f32[1,128], index: 4, kind: input, shape index: {}]
  %s5 = inlined_call_operand.vmem [shape: bf16[2,128], index: 5, kind: output, shape index: {}]
  %s6 = sld [smem:[#allocation0]]
  $region64: #{mlp_forward.1} parent=0
    _
  %s8 = ssub.s32 1, %s6
  %s9 = scalar_select 0, %s8, %s6
  $region1: #{mlp_forward.1} parent=0
    #allocation2 [shape = 'u8[524288]{0}', space=vmem, size = 0x80000, scoped, tag = 'input window, operand 1, single buffered']
    #allocation3 [shape = 's32[1]{0}', space=sflag, size = 0x4, scoped, tag = 'scoped memory for mlp_forward.1']
    #allocation4 [shape = 'u8[2048]{0}', space=vmem, size = 0x800, scoped, tag = 'output window, operand 0, single buffered']
    %10 = vsyncpa [#allocation3], 0
    // Predicated region
    $region2: #{mlp_forward.1} parent=1 // pred_check
      _
    $region3: #{mlp_forward.1} parent=1 // pred_check_branch
      %12 = sbr.rel (0) target = $region5
    $region4: #{mlp_forward.1} parent=1 // pred_region
      _
    $region5: #{mlp_forward.1} parent=1 // pred_fallthru
      _
    // Predicated region
    $region6: #{mlp_forward.1} parent=1 // pred_check
      _
    $region7: #{mlp_forward.1} parent=1 // pred_check_branch
      %14 = sbr.rel (0) target = $region9
    $region8: #{mlp_forward.1} parent=1 // pred_region
      %16 = vsyncadd [#allocation3], 0
      %s17 = sshll.u32 %s1, 4
      %s18 = int_to_ptr.hbm [resolvable:$true] %s17
      %s19 = sshll.u32 [#allocation2], 4
      %s20 = int_to_ptr.vmem [resolvable:$true] %s19
      %25 = dma.hbm_to_vmem [thread:$0]  %s18, 16384, %s20, [#allocation3], 128, 128, 8
    $region9: #{mlp_forward.1} parent=1 // pred_fallthru
      _
    // Predicated region
    $region10: #{mlp_forward.1} parent=1 // pred_check
      _
    $region11: #{mlp_forward.1} parent=1 // pred_check_branch
      %27 = sbr.rel (0) target = $region13
    $region12: #{mlp_forward.1} parent=1 // pred_region
      _
    $region13: #{mlp_forward.1} parent=1 // pred_fallthru
      _
    // Predicated region
    $region14: #{mlp_forward.1} parent=1 // pred_check
      _
    $region15: #{mlp_forward.1} parent=1 // pred_check_branch
      %29 = sbr.rel (0) target = $region17
    $region16: #{mlp_forward.1} parent=1 // pred_region
      _
    $region17: #{mlp_forward.1} parent=1 // pred_fallthru
      _
    // Predicated region
    $region18: #{mlp_forward.1} parent=1 // pred_check
      _
    $region19: #{mlp_forward.1} parent=1 // pred_check_branch
      %31 = sbr.rel (0) target = $region21
    $region20: #{mlp_forward.1} parent=1 // pred_region
      _
    $region21: #{mlp_forward.1} parent=1 // pred_fallthru
      _
    // Predicated region
    $region22: #{mlp_forward.1} parent=1 // pred_check
      _
    $region23: #{mlp_forward.1} parent=1 // pred_check_branch
      %33 = sbr.rel (0) target = $region25
    $region24: #{mlp_forward.1} parent=1 // pred_region
      %35 = dma.done [#allocation3], 16384
    $region25: #{mlp_forward.1} parent=1 // pred_fallthru
      _
    %v36 = vld [vmem:[%s0] sm:$0xff]
    %v37 = vld [vmem:[%s0 + $0x8] sm:$0xff]
    %v38 = vld [vmem:[%s0 + $0x10] sm:$0xff]
    %v39 = vld [vmem:[%s0 + $0x18] sm:$0xff]
    %v40 = vld [vmem:[%s0 + $0x20] sm:$0xff]
    %v41 = vld [vmem:[%s0 + $0x28] sm:$0xff]
    %v42 = vld [vmem:[%s0 + $0x30] sm:$0xff]
    %v43 = vld [vmem:[%s0 + $0x38] sm:$0xff]
    %52 = vst [vmem:[#allocation1] ss:$4 sm:$0xff] %v36
    %s53 = scalar_lea.vmem [#allocation1], 1
    %54 = vst [vmem:[%s53] ss:$4 sm:$0xff] %v38
    %s55 = scalar_lea.vmem [#allocation1], 2
    %56 = vst [vmem:[%s55] ss:$4 sm:$0xff] %v40
    %s57 = scalar_lea.vmem [#allocation1], 3
    %58 = vst [vmem:[%s57] ss:$4 sm:$0xff] %v42
    %s59 = scalar_lea.vmem [#allocation1], 32
    %60 = vst [vmem:[%s59] ss:$4 sm:$0xff] %v37
    %s61 = scalar_lea.vmem [#allocation1], 33
    %62 = vst [vmem:[%s61] ss:$4 sm:$0xff] %v39
    %s63 = scalar_lea.vmem [#allocation1], 34
    %64 = vst [vmem:[%s63] ss:$4 sm:$0xff] %v41
    %s65 = scalar_lea.vmem [#allocation1], 35
    %66 = vst [vmem:[%s65] ss:$4 sm:$0xff] %v43
    %v67 = vld.sshfl [vmem:[#allocation1] sm:$0xff pattern:$0x73625140]
    %v68 = vld.sshfl [vmem:[#allocation1 + $0x8] sm:$0xff pattern:$0x73625140]
    %v69 = vld.sshfl [vmem:[#allocation1 + $0x10] sm:$0xff pattern:$0x73625140]
    %v70 = vld.sshfl [vmem:[#allocation1 + $0x18] sm:$0xff pattern:$0x73625140]
    %v71 = vld.sshfl [vmem:[#allocation1 + $0x20] sm:$0xff pattern:$0x73625140]
    %v72 = vld.sshfl [vmem:[#allocation1 + $0x28] sm:$0xff pattern:$0x73625140]
    %v73 = vld.sshfl [vmem:[#allocation1 + $0x30] sm:$0xff pattern:$0x73625140]
    %v74 = vld.sshfl [vmem:[#allocation1 + $0x38] sm:$0xff pattern:$0x73625140]
    %v83 = vpack.c.bf16 %v67, %v67
    %v84 = vpack.c.bf16 %v68, %v68
    %v85 = vpack.c.bf16 %v69, %v69
    %v86 = vpack.c.bf16 %v70, %v70
    %v87 = vpack.c.bf16 %v71, %v71
    %v88 = vpack.c.bf16 %v72, %v72
    %v89 = vpack.c.bf16 %v73, %v73
    %v90 = vpack.c.bf16 %v74, %v74
    %v91 = vld [vmem:[#allocation2] sm:$0xff]
    %v92 = vld [vmem:[#allocation2 + $0x8] sm:$0xff]
    %v93 = vld [vmem:[#allocation2 + $0x10] sm:$0xff]
    %v94 = vld [vmem:[#allocation2 + $0x18] sm:$0xff]
    %v95 = vld [vmem:[#allocation2 + $0x20] sm:$0xff]
    %v96 = vld [vmem:[#allocation2 + $0x28] sm:$0xff]
    %v97 = vld [vmem:[#allocation2 + $0x30] sm:$0xff]
    %v98 = vld [vmem:[#allocation2 + $0x38] sm:$0xff]
    %v99 = vld [vmem:[#allocation2 + $0x40] sm:$0xff]
    %v100 = vld [vmem:[#allocation2 + $0x48] sm:$0xff]
    %v101 = vld [vmem:[#allocation2 + $0x50] sm:$0xff]
    %v102 = vld [vmem:[#allocation2 + $0x58] sm:$0xff]
    %v103 = vld [vmem:[#allocation2 + $0x60] sm:$0xff]
    %v104 = vld [vmem:[#allocation2 + $0x68] sm:$0xff]
    %v105 = vld [vmem:[#allocation2 + $0x70] sm:$0xff]
    %v106 = vld [vmem:[#allocation2 + $0x78] sm:$0xff]
    %v107 = vld [vmem:[#allocation2 + $0x80] sm:$0xff]
    %v108 = vld [vmem:[#allocation2 + $0x88] sm:$0xff]
    %v109 = vld [vmem:[#allocation2 + $0x90] sm:$0xff]
    %v110 = vld [vmem:[#allocation2 + $0x98] sm:$0xff]
    %v111 = vld [vmem:[#allocation2 + $0xa0] sm:$0xff]
    %v112 = vld [vmem:[#allocation2 + $0xa8] sm:$0xff]
    %v113 = vld [vmem:[#allocation2 + $0xb0] sm:$0xff]
    %v114 = vld [vmem:[#allocation2 + $0xb8] sm:$0xff]
    %v115 = vld [vmem:[#allocation2 + $0xc0] sm:$0xff]
    %v116 = vld [vmem:[#allocation2 + $0xc8] sm:$0xff]
    %v117 = vld [vmem:[#allocation2 + $0xd0] sm:$0xff]
    %v118 = vld [vmem:[#allocation2 + $0xd8] sm:$0xff]
    %v119 = vld [vmem:[#allocation2 + $0xe0] sm:$0xff]
    %v120 = vld [vmem:[#allocation2 + $0xe8] sm:$0xff]
    %v121 = vld [vmem:[#allocation2 + $0xf0] sm:$0xff]
    %v122 = vld [vmem:[#allocation2 + $0xf8] sm:$0xff]
    %v123 = vld [vmem:[#allocation2 + $0x100] sm:$0xff]
    %v124 = vld [vmem:[#allocation2 + $0x108] sm:$0xff]
    %v125 = vld [vmem:[#allocation2 + $0x110] sm:$0xff]
    %v126 = vld [vmem:[#allocation2 + $0x118] sm:$0xff]
    %v127 = vld [vmem:[#allocation2 + $0x120] sm:$0xff]
    %v128 = vld [vmem:[#allocation2 + $0x128] sm:$0xff]
    %v129 = vld [vmem:[#allocation2 + $0x130] sm:$0xff]
    %v130 = vld [vmem:[#allocation2 + $0x138] sm:$0xff]
    %v131 = vld [vmem:[#allocation2 + $0x140] sm:$0xff]
    %v132 = vld [vmem:[#allocation2 + $0x148] sm:$0xff]
    %v133 = vld [vmem:[#allocation2 + $0x150] sm:$0xff]
    %v134 = vld [vmem:[#allocation2 + $0x158] sm:$0xff]
    %v135 = vld [vmem:[#allocation2 + $0x160] sm:$0xff]
    %v136 = vld [vmem:[#allocation2 + $0x168] sm:$0xff]
    %v137 = vld [vmem:[#allocation2 + $0x170] sm:$0xff]
    %v138 = vld [vmem:[#allocation2 + $0x178] sm:$0xff]
    %v139 = vld [vmem:[#allocation2 + $0x180] sm:$0xff]
    %v140 = vld [vmem:[#allocation2 + $0x188] sm:$0xff]
    %v141 = vld [vmem:[#allocation2 + $0x190] sm:$0xff]
    %v142 = vld [vmem:[#allocation2 + $0x198] sm:$0xff]
    %v143 = vld [vmem:[#allocation2 + $0x1a0] sm:$0xff]
    %v144 = vld [vmem:[#allocation2 + $0x1a8] sm:$0xff]
    %v145 = vld [vmem:[#allocation2 + $0x1b0] sm:$0xff]
    %v146 = vld [vmem:[#allocation2 + $0x1b8] sm:$0xff]
    %v147 = vld [vmem:[#allocation2 + $0x1c0] sm:$0xff]
    %v148 = vld [vmem:[#allocation2 + $0x1c8] sm:$0xff]
    %v149 = vld [vmem:[#allocation2 + $0x1d0] sm:$0xff]
    %v150 = vld [vmem:[#allocation2 + $0x1d8] sm:$0xff]
    %v151 = vld [vmem:[#allocation2 + $0x1e0] sm:$0xff]
    %v152 = vld [vmem:[#allocation2 + $0x1e8] sm:$0xff]
    %v153 = vld [vmem:[#allocation2 + $0x1f0] sm:$0xff]
    %v154 = vld [vmem:[#allocation2 + $0x1f8] sm:$0xff]
    %v155 = vld [vmem:[#allocation2 + $0x200] sm:$0xff]
    %v156 = vld [vmem:[#allocation2 + $0x208] sm:$0xff]
    %v157 = vld [vmem:[#allocation2 + $0x210] sm:$0xff]
    %v158 = vld [vmem:[#allocation2 + $0x218] sm:$0xff]
    %v159 = vld [vmem:[#allocation2 + $0x220] sm:$0xff]
    %v160 = vld [vmem:[#allocation2 + $0x228] sm:$0xff]
    %v161 = vld [vmem:[#allocation2 + $0x230] sm:$0xff]
    %v162 = vld [vmem:[#allocation2 + $0x238] sm:$0xff]
    %v163 = vld [vmem:[#allocation2 + $0x240] sm:$0xff]
    %v164 = vld [vmem:[#allocation2 + $0x248] sm:$0xff]
    %v165 = vld [vmem:[#allocation2 + $0x250] sm:$0xff]
    %v166 = vld [vmem:[#allocation2 + $0x258] sm:$0xff]
    %v167 = vld [vmem:[#allocation2 + $0x260] sm:$0xff]
    %v168 = vld [vmem:[#allocation2 + $0x268] sm:$0xff]
    %v169 = vld [vmem:[#allocation2 + $0x270] sm:$0xff]
    %v170 = vld [vmem:[#allocation2 + $0x278] sm:$0xff]
    %v171 = vld [vmem:[#allocation2 + $0x280] sm:$0xff]
    %v172 = vld [vmem:[#allocation2 + $0x288] sm:$0xff]
    %v173 = vld [vmem:[#allocation2 + $0x290] sm:$0xff]
    %v174 = vld [vmem:[#allocation2 + $0x298] sm:$0xff]
    %v175 = vld [vmem:[#allocation2 + $0x2a0] sm:$0xff]
    %v176 = vld [vmem:[#allocation2 + $0x2a8] sm:$0xff]
    %v177 = vld [vmem:[#allocation2 + $0x2b0] sm:$0xff]
    %v178 = vld [vmem:[#allocation2 + $0x2b8] sm:$0xff]
    %v179 = vld [vmem:[#allocation2 + $0x2c0] sm:$0xff]
    %v180 = vld [vmem:[#allocation2 + $0x2c8] sm:$0xff]
    %v181 = vld [vmem:[#allocation2 + $0x2d0] sm:$0xff]
    %v182 = vld [vmem:[#allocation2 + $0x2d8] sm:$0xff]
    %v183 = vld [vmem:[#allocation2 + $0x2e0] sm:$0xff]
    %v184 = vld [vmem:[#allocation2 + $0x2e8] sm:$0xff]
    %v185 = vld [vmem:[#allocation2 + $0x2f0] sm:$0xff]
    %v186 = vld [vmem:[#allocation2 + $0x2f8] sm:$0xff]
    %v187 = vld [vmem:[#allocation2 + $0x300] sm:$0xff]
    %v188 = vld [vmem:[#allocation2 + $0x308] sm:$0xff]
    %v189 = vld [vmem:[#allocation2 + $0x310] sm:$0xff]
    %v190 = vld [vmem:[#allocation2 + $0x318] sm:$0xff]
    %v191 = vld [vmem:[#allocation2 + $0x320] sm:$0xff]
    %v192 = vld [vmem:[#allocation2 + $0x328] sm:$0xff]
    %v193 = vld [vmem:[#allocation2 + $0x330] sm:$0xff]
    %v194 = vld [vmem:[#allocation2 + $0x338] sm:$0xff]
    %v195 = vld [vmem:[#allocation2 + $0x340] sm:$0xff]
    %v196 = vld [vmem:[#allocation2 + $0x348] sm:$0xff]
    %v197 = vld [vmem:[#allocation2 + $0x350] sm:$0xff]
    %v198 = vld [vmem:[#allocation2 + $0x358] sm:$0xff]
    %v199 = vld [vmem:[#allocation2 + $0x360] sm:$0xff]
    %v200 = vld [vmem:[#allocation2 + $0x368] sm:$0xff]
    %v201 = vld [vmem:[#allocation2 + $0x370] sm:$0xff]
    %v202 = vld [vmem:[#allocation2 + $0x378] sm:$0xff]
    %v203 = vld [vmem:[#allocation2 + $0x380] sm:$0xff]
    %v204 = vld [vmem:[#allocation2 + $0x388] sm:$0xff]
    %v205 = vld [vmem:[#allocation2 + $0x390] sm:$0xff]
    %v206 = vld [vmem:[#allocation2 + $0x398] sm:$0xff]
    %v207 = vld [vmem:[#allocation2 + $0x3a0] sm:$0xff]
    %v208 = vld [vmem:[#allocation2 + $0x3a8] sm:$0xff]
    %v209 = vld [vmem:[#allocation2 + $0x3b0] sm:$0xff]
    %v210 = vld [vmem:[#allocation2 + $0x3b8] sm:$0xff]
    %v211 = vld [vmem:[#allocation2 + $0x3c0] sm:$0xff]
    %v212 = vld [vmem:[#allocation2 + $0x3c8] sm:$0xff]
    %v213 = vld [vmem:[#allocation2 + $0x3d0] sm:$0xff]
    %v214 = vld [vmem:[#allocation2 + $0x3d8] sm:$0xff]
    %v215 = vld [vmem:[#allocation2 + $0x3e0] sm:$0xff]
    %v216 = vld [vmem:[#allocation2 + $0x3e8] sm:$0xff]
    %v217 = vld [vmem:[#allocation2 + $0x3f0] sm:$0xff]
    %v218 = vld [vmem:[#allocation2 + $0x3f8] sm:$0xff]
    %v219 = vld [vmem:[%s2] sm:$0x3]
    %v221 = vperm.slane %v219, 0
    %v222 = vperm.slane %v219, 1
    %v353 = vunpack.c.l.b16 %v91
    %v354 = vunpack.c.h.b16 %v91
    %v355 = vunpack.c.l.b16 %v92
    %v356 = vunpack.c.h.b16 %v92
    %v357 = vunpack.c.l.b16 %v93
    %v358 = vunpack.c.h.b16 %v93
    %v359 = vunpack.c.l.b16 %v94
    %v360 = vunpack.c.h.b16 %v94
    %v361 = vunpack.c.l.b16 %v95
    %v362 = vunpack.c.h.b16 %v95
    %v363 = vunpack.c.l.b16 %v96
    %v364 = vunpack.c.h.b16 %v96
    %v365 = vunpack.c.l.b16 %v97
    %v366 = vunpack.c.h.b16 %v97
    %v367 = vunpack.c.l.b16 %v98
    %v368 = vunpack.c.h.b16 %v98
    %v369 = vunpack.c.l.b16 %v99
    %v370 = vunpack.c.h.b16 %v99
    %v371 = vunpack.c.l.b16 %v100
    %v372 = vunpack.c.h.b16 %v100
    %v373 = vunpack.c.l.b16 %v101
    %v374 = vunpack.c.h.b16 %v101
    %v375 = vunpack.c.l.b16 %v102
    %v376 = vunpack.c.h.b16 %v102
    %v377 = vunpack.c.l.b16 %v103
    %v378 = vunpack.c.h.b16 %v103
    %v379 = vunpack.c.l.b16 %v104
    %v380 = vunpack.c.h.b16 %v104
    %v381 = vunpack.c.l.b16 %v105
    %v382 = vunpack.c.h.b16 %v105
    %v383 = vunpack.c.l.b16 %v106
    %v384 = vunpack.c.h.b16 %v106
    %v385 = vunpack.c.l.b16 %v107
    %v386 = vunpack.c.h.b16 %v107
    %v387 = vunpack.c.l.b16 %v108
    %v388 = vunpack.c.h.b16 %v108
    %v389 = vunpack.c.l.b16 %v109
    %v390 = vunpack.c.h.b16 %v109
    %v391 = vunpack.c.l.b16 %v110
    %v392 = vunpack.c.h.b16 %v110
    %v393 = vunpack.c.l.b16 %v111
    %v394 = vunpack.c.h.b16 %v111
    %v395 = vunpack.c.l.b16 %v112
    %v396 = vunpack.c.h.b16 %v112
    %v397 = vunpack.c.l.b16 %v113
    %v398 = vunpack.c.h.b16 %v113
    %v399 = vunpack.c.l.b16 %v114
    %v400 = vunpack.c.h.b16 %v114
    %v401 = vunpack.c.l.b16 %v115
    %v402 = vunpack.c.h.b16 %v115
    %v403 = vunpack.c.l.b16 %v116
    %v404 = vunpack.c.h.b16 %v116
    %v405 = vunpack.c.l.b16 %v117
    %v406 = vunpack.c.h.b16 %v117
    %v407 = vunpack.c.l.b16 %v118
    %v408 = vunpack.c.h.b16 %v118
    %v409 = vunpack.c.l.b16 %v119
    %v410 = vunpack.c.h.b16 %v119
    %v411 = vunpack.c.l.b16 %v120
    %v412 = vunpack.c.h.b16 %v120
    %v413 = vunpack.c.l.b16 %v121
    %v414 = vunpack.c.h.b16 %v121
    %v415 = vunpack.c.l.b16 %v122
    %v416 = vunpack.c.h.b16 %v122
    %v417 = vunpack.c.l.b16 %v123
    %v418 = vunpack.c.h.b16 %v123
    %v419 = vunpack.c.l.b16 %v124
    %v420 = vunpack.c.h.b16 %v124
    %v421 = vunpack.c.l.b16 %v125
    %v422 = vunpack.c.h.b16 %v125
    %v423 = vunpack.c.l.b16 %v126
    %v424 = vunpack.c.h.b16 %v126
    %v425 = vunpack.c.l.b16 %v127
    %v426 = vunpack.c.h.b16 %v127
    %v427 = vunpack.c.l.b16 %v128
    %v428 = vunpack.c.h.b16 %v128
    %v429 = vunpack.c.l.b16 %v129
    %v430 = vunpack.c.h.b16 %v129
    %v431 = vunpack.c.l.b16 %v130
    %v432 = vunpack.c.h.b16 %v130
    %v433 = vunpack.c.l.b16 %v131
    %v434 = vunpack.c.h.b16 %v131
    %v435 = vunpack.c.l.b16 %v132
    %v436 = vunpack.c.h.b16 %v132
    %v437 = vunpack.c.l.b16 %v133
    %v438 = vunpack.c.h.b16 %v133
    %v439 = vunpack.c.l.b16 %v134
    %v440 = vunpack.c.h.b16 %v134
    %v441 = vunpack.c.l.b16 %v135
    %v442 = vunpack.c.h.b16 %v135
    %v443 = vunpack.c.l.b16 %v136
    %v444 = vunpack.c.h.b16 %v136
    %v445 = vunpack.c.l.b16 %v137
    %v446 = vunpack.c.h.b16 %v137
    %v447 = vunpack.c.l.b16 %v138
    %v448 = vunpack.c.h.b16 %v138
    %v449 = vunpack.c.l.b16 %v139
    %v450 = vunpack.c.h.b16 %v139
    %v451 = vunpack.c.l.b16 %v140
    %v452 = vunpack.c.h.b16 %v140
    %v453 = vunpack.c.l.b16 %v141
    %v454 = vunpack.c.h.b16 %v141
    %v455 = vunpack.c.l.b16 %v142
    %v456 = vunpack.c.h.b16 %v142
    %v457 = vunpack.c.l.b16 %v143
    %v458 = vunpack.c.h.b16 %v143
    %v459 = vunpack.c.l.b16 %v144
    %v460 = vunpack.c.h.b16 %v144
    %v461 = vunpack.c.l.b16 %v145
    %v462 = vunpack.c.h.b16 %v145
    %v463 = vunpack.c.l.b16 %v146
    %v464 = vunpack.c.h.b16 %v146
    %v465 = vunpack.c.l.b16 %v147
    %v466 = vunpack.c.h.b16 %v147
    %v467 = vunpack.c.l.b16 %v148
    %v468 = vunpack.c.h.b16 %v148
    %v469 = vunpack.c.l.b16 %v149
    %v470 = vunpack.c.h.b16 %v149
    %v471 = vunpack.c.l.b16 %v150
    %v472 = vunpack.c.h.b16 %v150
    %v473 = vunpack.c.l.b16 %v151
    %v474 = vunpack.c.h.b16 %v151
    %v475 = vunpack.c.l.b16 %v152
    %v476 = vunpack.c.h.b16 %v152
    %v477 = vunpack.c.l.b16 %v153
    %v478 = vunpack.c.h.b16 %v153
    %v479 = vunpack.c.l.b16 %v154
    %v480 = vunpack.c.h.b16 %v154
    %v481 = vunpack.c.l.b16 %v155
    %v482 = vunpack.c.h.b16 %v155
    %v483 = vunpack.c.l.b16 %v156
    %v484 = vunpack.c.h.b16 %v156
    %v485 = vunpack.c.l.b16 %v157
    %v486 = vunpack.c.h.b16 %v157
    %v487 = vunpack.c.l.b16 %v158
    %v488 = vunpack.c.h.b16 %v158
    %v489 = vunpack.c.l.b16 %v159
    %v490 = vunpack.c.h.b16 %v159
    %v491 = vunpack.c.l.b16 %v160
    %v492 = vunpack.c.h.b16 %v160
    %v493 = vunpack.c.l.b16 %v161
    %v494 = vunpack.c.h.b16 %v161
    %v495 = vunpack.c.l.b16 %v162
    %v496 = vunpack.c.h.b16 %v162
    %v497 = vunpack.c.l.b16 %v163
    %v498 = vunpack.c.h.b16 %v163
    %v499 = vunpack.c.l.b16 %v164
    %v500 = vunpack.c.h.b16 %v164
    %v501 = vunpack.c.l.b16 %v165
    %v502 = vunpack.c.h.b16 %v165
    %v503 = vunpack.c.l.b16 %v166
    %v504 = vunpack.c.h.b16 %v166
    %v505 = vunpack.c.l.b16 %v167
    %v506 = vunpack.c.h.b16 %v167
    %v507 = vunpack.c.l.b16 %v168
    %v508 = vunpack.c.h.b16 %v168
    %v509 = vunpack.c.l.b16 %v169
    %v510 = vunpack.c.h.b16 %v169
    %v511 = vunpack.c.l.b16 %v170
    %v512 = vunpack.c.h.b16 %v170
    %v513 = vunpack.c.l.b16 %v171
    %v514 = vunpack.c.h.b16 %v171
    %v515 = vunpack.c.l.b16 %v172
    %v516 = vunpack.c.h.b16 %v172
    %v517 = vunpack.c.l.b16 %v173
    %v518 = vunpack.c.h.b16 %v173
    %v519 = vunpack.c.l.b16 %v174
    %v520 = vunpack.c.h.b16 %v174
    %v521 = vunpack.c.l.b16 %v175
    %v522 = vunpack.c.h.b16 %v175
    %v523 = vunpack.c.l.b16 %v176
    %v524 = vunpack.c.h.b16 %v176
    %v525 = vunpack.c.l.b16 %v177
    %v526 = vunpack.c.h.b16 %v177
    %v527 = vunpack.c.l.b16 %v178
    %v528 = vunpack.c.h.b16 %v178
    %v529 = vunpack.c.l.b16 %v179
    %v530 = vunpack.c.h.b16 %v179
    %v531 = vunpack.c.l.b16 %v180
    %v532 = vunpack.c.h.b16 %v180
    %v533 = vunpack.c.l.b16 %v181
    %v534 = vunpack.c.h.b16 %v181
    %v535 = vunpack.c.l.b16 %v182
    %v536 = vunpack.c.h.b16 %v182
    %v537 = vunpack.c.l.b16 %v183
    %v538 = vunpack.c.h.b16 %v183
    %v539 = vunpack.c.l.b16 %v184
    %v540 = vunpack.c.h.b16 %v184
    %v541 = vunpack.c.l.b16 %v185
    %v542 = vunpack.c.h.b16 %v185
    %v543 = vunpack.c.l.b16 %v186
    %v544 = vunpack.c.h.b16 %v186
    %v545 = vunpack.c.l.b16 %v187
    %v546 = vunpack.c.h.b16 %v187
    %v547 = vunpack.c.l.b16 %v188
    %v548 = vunpack.c.h.b16 %v188
    %v549 = vunpack.c.l.b16 %v189
    %v550 = vunpack.c.h.b16 %v189
    %v551 = vunpack.c.l.b16 %v190
    %v552 = vunpack.c.h.b16 %v190
    %v553 = vunpack.c.l.b16 %v191
    %v554 = vunpack.c.h.b16 %v191
    %v555 = vunpack.c.l.b16 %v192
    %v556 = vunpack.c.h.b16 %v192
    %v557 = vunpack.c.l.b16 %v193
    %v558 = vunpack.c.h.b16 %v193
    %v559 = vunpack.c.l.b16 %v194
    %v560 = vunpack.c.h.b16 %v194
    %v561 = vunpack.c.l.b16 %v195
    %v562 = vunpack.c.h.b16 %v195
    %v563 = vunpack.c.l.b16 %v196
    %v564 = vunpack.c.h.b16 %v196
    %v565 = vunpack.c.l.b16 %v197
    %v566 = vunpack.c.h.b16 %v197
    %v567 = vunpack.c.l.b16 %v198
    %v568 = vunpack.c.h.b16 %v198
    %v569 = vunpack.c.l.b16 %v199
    %v570 = vunpack.c.h.b16 %v199
    %v571 = vunpack.c.l.b16 %v200
    %v572 = vunpack.c.h.b16 %v200
    %v573 = vunpack.c.l.b16 %v201
    %v574 = vunpack.c.h.b16 %v201
    %v575 = vunpack.c.l.b16 %v202
    %v576 = vunpack.c.h.b16 %v202
    %v577 = vunpack.c.l.b16 %v203
    %v578 = vunpack.c.h.b16 %v203
    %v579 = vunpack.c.l.b16 %v204
    %v580 = vunpack.c.h.b16 %v204
    %v581 = vunpack.c.l.b16 %v205
    %v582 = vunpack.c.h.b16 %v205
    %v583 = vunpack.c.l.b16 %v206
    %v584 = vunpack.c.h.b16 %v206
    %v585 = vunpack.c.l.b16 %v207
    %v586 = vunpack.c.h.b16 %v207
    %v587 = vunpack.c.l.b16 %v208
    %v588 = vunpack.c.h.b16 %v208
    %v589 = vunpack.c.l.b16 %v209
    %v590 = vunpack.c.h.b16 %v209
    %v591 = vunpack.c.l.b16 %v210
    %v592 = vunpack.c.h.b16 %v210
    %v593 = vunpack.c.l.b16 %v211
    %v594 = vunpack.c.h.b16 %v211
    %v595 = vunpack.c.l.b16 %v212
    %v596 = vunpack.c.h.b16 %v212
    %v597 = vunpack.c.l.b16 %v213
    %v598 = vunpack.c.h.b16 %v213
    %v599 = vunpack.c.l.b16 %v214
    %v600 = vunpack.c.h.b16 %v214
    %v601 = vunpack.c.l.b16 %v215
    %v602 = vunpack.c.h.b16 %v215
    %v603 = vunpack.c.l.b16 %v216
    %v604 = vunpack.c.h.b16 %v216
    %v605 = vunpack.c.l.b16 %v217
    %v606 = vunpack.c.h.b16 %v217
    %v607 = vunpack.c.l.b16 %v218
    %v608 = vunpack.c.h.b16 %v218
    %v609 = vpack.c.b16 %v355, %v353
    %v610 = vpack.c.b16 %v356, %v354
    %v611 = vpack.c.b16 %v359, %v357
    %v612 = vpack.c.b16 %v360, %v358
    %v613 = vpack.c.b16 %v363, %v361
    %v614 = vpack.c.b16 %v364, %v362
    %v615 = vpack.c.b16 %v367, %v365
    %v616 = vpack.c.b16 %v368, %v366
    %v617 = vpack.c.b16 %v371, %v369
    %v618 = vpack.c.b16 %v372, %v370
    %v619 = vpack.c.b16 %v375, %v373
    %v620 = vpack.c.b16 %v376, %v374
    %v621 = vpack.c.b16 %v379, %v377
    %v622 = vpack.c.b16 %v380, %v378
    %v623 = vpack.c.b16 %v383, %v381
    %v624 = vpack.c.b16 %v384, %v382
    %v625 = vpack.c.b16 %v387, %v385
    %v626 = vpack.c.b16 %v388, %v386
    %v627 = vpack.c.b16 %v391, %v389
    %v628 = vpack.c.b16 %v392, %v390
    %v629 = vpack.c.b16 %v395, %v393
    %v630 = vpack.c.b16 %v396, %v394
    %v631 = vpack.c.b16 %v399, %v397
    %v632 = vpack.c.b16 %v400, %v398
    %v633 = vpack.c.b16 %v403, %v401
    %v634 = vpack.c.b16 %v404, %v402
    %v635 = vpack.c.b16 %v407, %v405
    %v636 = vpack.c.b16 %v408, %v406
    %v637 = vpack.c.b16 %v411, %v409
    %v638 = vpack.c.b16 %v412, %v410
    %v639 = vpack.c.b16 %v415, %v413
    %v640 = vpack.c.b16 %v416, %v414
    %v641 = vpack.c.b16 %v419, %v417
    %v642 = vpack.c.b16 %v420, %v418
    %v643 = vpack.c.b16 %v423, %v421
    %v644 = vpack.c.b16 %v424, %v422
    %v645 = vpack.c.b16 %v427, %v425
    %v646 = vpack.c.b16 %v428, %v426
    %v647 = vpack.c.b16 %v431, %v429
    %v648 = vpack.c.b16 %v432, %v430
    %v649 = vpack.c.b16 %v435, %v433
    %v650 = vpack.c.b16 %v436, %v434
    %v651 = vpack.c.b16 %v439, %v437
    %v652 = vpack.c.b16 %v440, %v438
    %v653 = vpack.c.b16 %v443, %v441
    %v654 = vpack.c.b16 %v444, %v442
    %v655 = vpack.c.b16 %v447, %v445
    %v656 = vpack.c.b16 %v448, %v446
    %v657 = vpack.c.b16 %v451, %v449
    %v658 = vpack.c.b16 %v452, %v450
    %v659 = vpack.c.b16 %v455, %v453
    %v660 = vpack.c.b16 %v456, %v454
    %v661 = vpack.c.b16 %v459, %v457
    %v662 = vpack.c.b16 %v460, %v458
    %v663 = vpack.c.b16 %v463, %v461
    %v664 = vpack.c.b16 %v464, %v462
    %v665 = vpack.c.b16 %v467, %v465
    %v666 = vpack.c.b16 %v468, %v466
    %v667 = vpack.c.b16 %v471, %v469
    %v668 = vpack.c.b16 %v472, %v470
    %v669 = vpack.c.b16 %v475, %v473
    %v670 = vpack.c.b16 %v476, %v474
    %v671 = vpack.c.b16 %v479, %v477
    %v672 = vpack.c.b16 %v480, %v478
    %v673 = vpack.c.b16 %v483, %v481
    %v674 = vpack.c.b16 %v484, %v482
    %v675 = vpack.c.b16 %v487, %v485
    %v676 = vpack.c.b16 %v488, %v486
    %v677 = vpack.c.b16 %v491, %v489
    %v678 = vpack.c.b16 %v492, %v490
    %v679 = vpack.c.b16 %v495, %v493
    %v680 = vpack.c.b16 %v496, %v494
    %v681 = vpack.c.b16 %v499, %v497
    %v682 = vpack.c.b16 %v500, %v498
    %v683 = vpack.c.b16 %v503, %v501
    %v684 = vpack.c.b16 %v504, %v502
    %v685 = vpack.c.b16 %v507, %v505
    %v686 = vpack.c.b16 %v508, %v506
    %v687 = vpack.c.b16 %v511, %v509
    %v688 = vpack.c.b16 %v512, %v510
    %v689 = vpack.c.b16 %v515, %v513
    %v690 = vpack.c.b16 %v516, %v514
    %v691 = vpack.c.b16 %v519, %v517
    %v692 = vpack.c.b16 %v520, %v518
    %v693 = vpack.c.b16 %v523, %v521
    %v694 = vpack.c.b16 %v524, %v522
    %v695 = vpack.c.b16 %v527, %v525
    %v696 = vpack.c.b16 %v528, %v526
    %v697 = vpack.c.b16 %v531, %v529
    %v698 = vpack.c.b16 %v532, %v530
    %v699 = vpack.c.b16 %v535, %v533
    %v700 = vpack.c.b16 %v536, %v534
    %v701 = vpack.c.b16 %v539, %v537
    %v702 = vpack.c.b16 %v540, %v538
    %v703 = vpack.c.b16 %v543, %v541
    %v704 = vpack.c.b16 %v544, %v542
    %v705 = vpack.c.b16 %v547, %v545
    %v706 = vpack.c.b16 %v548, %v546
    %v707 = vpack.c.b16 %v551, %v549
    %v708 = vpack.c.b16 %v552, %v550
    %v709 = vpack.c.b16 %v555, %v553
    %v710 = vpack.c.b16 %v556, %v554
    %v711 = vpack.c.b16 %v559, %v557
    %v712 = vpack.c.b16 %v560, %v558
    %v713 = vpack.c.b16 %v563, %v561
    %v714 = vpack.c.b16 %v564, %v562
    %v715 = vpack.c.b16 %v567, %v565
    %v716 = vpack.c.b16 %v568, %v566
    %v717 = vpack.c.b16 %v571, %v569
    %v718 = vpack.c.b16 %v572, %v570
    %v719 = vpack.c.b16 %v575, %v573
    %v720 = vpack.c.b16 %v576, %v574
    %v721 = vpack.c.b16 %v579, %v577
    %v722 = vpack.c.b16 %v580, %v578
    %v723 = vpack.c.b16 %v583, %v581
    %v724 = vpack.c.b16 %v584, %v582
    %v725 = vpack.c.b16 %v587, %v585
    %v726 = vpack.c.b16 %v588, %v586
    %v727 = vpack.c.b16 %v591, %v589
    %v728 = vpack.c.b16 %v592, %v590
    %v729 = vpack.c.b16 %v595, %v593
    %v730 = vpack.c.b16 %v596, %v594
    %v731 = vpack.c.b16 %v599, %v597
    %v732 = vpack.c.b16 %v600, %v598
    %v733 = vpack.c.b16 %v603, %v601
    %v734 = vpack.c.b16 %v604, %v602
    %v735 = vpack.c.b16 %v607, %v605
    %v736 = vpack.c.b16 %v608, %v606
    %865 = vmatpush.bf16.msra.mxu0 %v623
    %866 = vmatpush.bf16.msra.mxu0 %v621
    %867 = vmatpush.bf16.msra.mxu0 %v619
    %868 = vmatpush.bf16.msra.mxu0 %v617
    %869 = vmatpush.bf16.msra.mxu0 %v615
    %870 = vmatpush.bf16.msra.mxu0 %v613
    %871 = vmatpush.bf16.msra.mxu0 %v611
    %872 = vmatpush.bf16.msra.mxu0 %v609
    %873 = vmatmul.bf16.gmra.mxu0 %v83
    %v874 = vpop.f32.mrf.mxu0
    %v875 = vadd.f32 %v221, %v874
    %v876 = vpop.f32.mrf.mxu0
    %877 = vdwg.mxu0
    %878 = vmatpush.bf16.msra.mxu0 %v639
    %879 = vmatpush.bf16.msra.mxu0 %v637
    %880 = vmatpush.bf16.msra.mxu0 %v635
    %881 = vmatpush.bf16.msra.mxu0 %v633
    %882 = vmatpush.bf16.msra.mxu0 %v631
    %883 = vmatpush.bf16.msra.mxu0 %v629
    %884 = vmatpush.bf16.msra.mxu0 %v627
    %885 = vmatpush.bf16.msra.mxu0 %v625
    %886 = vmatmul.bf16.gmra.mxu0 %v84
    %v887 = vpop.f32.mrf.mxu0
    %v888 = vadd.f32 %v875, %v887
    %v889 = vpop.f32.mrf.mxu0
    %890 = vdwg.mxu0
    %891 = vmatpush.bf16.msra.mxu0 %v655
    %892 = vmatpush.bf16.msra.mxu0 %v653
    %893 = vmatpush.bf16.msra.mxu0 %v651
    %894 = vmatpush.bf16.msra.mxu0 %v649
    %895 = vmatpush.bf16.msra.mxu0 %v647
    %896 = vmatpush.bf16.msra.mxu0 %v645
    %897 = vmatpush.bf16.msra.mxu0 %v643
    %898 = vmatpush.bf16.msra.mxu0 %v641
    %899 = vmatmul.bf16.gmra.mxu0 %v85
    %v900 = vpop.f32.mrf.mxu0
    %v901 = vadd.f32 %v888, %v900
    %v902 = vpop.f32.mrf.mxu0
    %903 = vdwg.mxu0
    %904 = vmatpush.bf16.msra.mxu0 %v671
    %905 = vmatpush.bf16.msra.mxu0 %v669
    %906 = vmatpush.bf16.msra.mxu0 %v667
    %907 = vmatpush.bf16.msra.mxu0 %v665
    %908 = vmatpush.bf16.msra.mxu0 %v663
    %909 = vmatpush.bf16.msra.mxu0 %v661
    %910 = vmatpush.bf16.msra.mxu0 %v659
    %911 = vmatpush.bf16.msra.mxu0 %v657
    %912 = vmatmul.bf16.gmra.mxu0 %v86
    %v913 = vpop.f32.mrf.mxu0
    %v914 = vadd.f32 %v901, %v913
    %v915 = vpop.f32.mrf.mxu0
    %916 = vdwg.mxu0
    %917 = vmatpush.bf16.msra.mxu0 %v687
    %918 = vmatpush.bf16.msra.mxu0 %v685
    %919 = vmatpush.bf16.msra.mxu0 %v683
    %920 = vmatpush.bf16.msra.mxu0 %v681
    %921 = vmatpush.bf16.msra.mxu0 %v679
    %922 = vmatpush.bf16.msra.mxu0 %v677
    %923 = vmatpush.bf16.msra.mxu0 %v675
    %924 = vmatpush.bf16.msra.mxu0 %v673
    %925 = vmatmul.bf16.gmra.mxu0 %v87
    %v926 = vpop.f32.mrf.mxu0
    %v927 = vadd.f32 %v914, %v926
    %v928 = vpop.f32.mrf.mxu0
    %929 = vdwg.mxu0
    %930 = vmatpush.bf16.msra.mxu0 %v703
    %931 = vmatpush.bf16.msra.mxu0 %v701
    %932 = vmatpush.bf16.msra.mxu0 %v699
    %933 = vmatpush.bf16.msra.mxu0 %v697
    %934 = vmatpush.bf16.msra.mxu0 %v695
    %935 = vmatpush.bf16.msra.mxu0 %v693
    %936 = vmatpush.bf16.msra.mxu0 %v691
    %937 = vmatpush.bf16.msra.mxu0 %v689
    %938 = vmatmul.bf16.gmra.mxu0 %v88
    %v939 = vpop.f32.mrf.mxu0
    %v940 = vadd.f32 %v927, %v939
    %v941 = vpop.f32.mrf.mxu0
    %942 = vdwg.mxu0
    %943 = vmatpush.bf16.msra.mxu0 %v719
    %944 = vmatpush.bf16.msra.mxu0 %v717
    %945 = vmatpush.bf16.msra.mxu0 %v715
    %946 = vmatpush.bf16.msra.mxu0 %v713
    %947 = vmatpush.bf16.msra.mxu0 %v711
    %948 = vmatpush.bf16.msra.mxu0 %v709
    %949 = vmatpush.bf16.msra.mxu0 %v707
    %950 = vmatpush.bf16.msra.mxu0 %v705
    %951 = vmatmul.bf16.gmra.mxu0 %v89
    %v952 = vpop.f32.mrf.mxu0
    %v953 = vadd.f32 %v940, %v952
    %v954 = vpop.f32.mrf.mxu0
    %955 = vdwg.mxu0
    %956 = vmatpush.bf16.msra.mxu0 %v735
    %957 = vmatpush.bf16.msra.mxu0 %v733
    %958 = vmatpush.bf16.msra.mxu0 %v731
    %959 = vmatpush.bf16.msra.mxu0 %v729
    %960 = vmatpush.bf16.msra.mxu0 %v727
    %961 = vmatpush.bf16.msra.mxu0 %v725
    %962 = vmatpush.bf16.msra.mxu0 %v723
    %963 = vmatpush.bf16.msra.mxu0 %v721
    %964 = vmatmul.bf16.gmra.mxu0 %v90
    %v965 = vpop.f32.mrf.mxu0
    %v966 = vadd.f32 %v953, %v965
    %v967 = vpop.f32.mrf.mxu0
    %968 = vdwg.mxu0
    %969 = vmatpush.bf16.msra.mxu0 %v624
    %970 = vmatpush.bf16.msra.mxu0 %v622
    %971 = vmatpush.bf16.msra.mxu0 %v620
    %972 = vmatpush.bf16.msra.mxu0 %v618
    %973 = vmatpush.bf16.msra.mxu0 %v616
    %974 = vmatpush.bf16.msra.mxu0 %v614
    %975 = vmatpush.bf16.msra.mxu0 %v612
    %976 = vmatpush.bf16.msra.mxu0 %v610
    %977 = vmatmul.bf16.gmra.mxu0 %v83
    %v978 = vpop.f32.mrf.mxu0
    %v979 = vadd.f32 %v222, %v978
    %v980 = vpop.f32.mrf.mxu0
    %981 = vdwg.mxu0
    %982 = vmatpush.bf16.msra.mxu0 %v640
    %983 = vmatpush.bf16.msra.mxu0 %v638
    %984 = vmatpush.bf16.msra.mxu0 %v636
    %985 = vmatpush.bf16.msra.mxu0 %v634
    %986 = vmatpush.bf16.msra.mxu0 %v632
    %987 = vmatpush.bf16.msra.mxu0 %v630
    %988 = vmatpush.bf16.msra.mxu0 %v628
    %989 = vmatpush.bf16.msra.mxu0 %v626
    %990 = vmatmul.bf16.gmra.mxu0 %v84
    %v991 = vpop.f32.mrf.mxu0
    %v992 = vadd.f32 %v979, %v991
    %v993 = vpop.f32.mrf.mxu0
    %994 = vdwg.mxu0
    %995 = vmatpush.bf16.msra.mxu0 %v656
    %996 = vmatpush.bf16.msra.mxu0 %v654
    %997 = vmatpush.bf16.msra.mxu0 %v652
    %998 = vmatpush.bf16.msra.mxu0 %v650
    %999 = vmatpush.bf16.msra.mxu0 %v648
    %1000 = vmatpush.bf16.msra.mxu0 %v646
    %1001 = vmatpush.bf16.msra.mxu0 %v644
    %1002 = vmatpush.bf16.msra.mxu0 %v642
    %1003 = vmatmul.bf16.gmra.mxu0 %v85
    %v1004 = vpop.f32.mrf.mxu0
    %v1005 = vadd.f32 %v992, %v1004
    %v1006 = vpop.f32.mrf.mxu0
    %1007 = vdwg.mxu0
    %1008 = vmatpush.bf16.msra.mxu0 %v672
    %1009 = vmatpush.bf16.msra.mxu0 %v670
    %1010 = vmatpush.bf16.msra.mxu0 %v668
    %1011 = vmatpush.bf16.msra.mxu0 %v666
    %1012 = vmatpush.bf16.msra.mxu0 %v664
    %1013 = vmatpush.bf16.msra.mxu0 %v662
    %1014 = vmatpush.bf16.msra.mxu0 %v660
    %1015 = vmatpush.bf16.msra.mxu0 %v658
    %1016 = vmatmul.bf16.gmra.mxu0 %v86
    %v1017 = vpop.f32.mrf.mxu0
    %v1018 = vadd.f32 %v1005, %v1017
    %v1019 = vpop.f32.mrf.mxu0
    %1020 = vdwg.mxu0
    %1021 = vmatpush.bf16.msra.mxu0 %v688
    %1022 = vmatpush.bf16.msra.mxu0 %v686
    %1023 = vmatpush.bf16.msra.mxu0 %v684
    %1024 = vmatpush.bf16.msra.mxu0 %v682
    %1025 = vmatpush.bf16.msra.mxu0 %v680
    %1026 = vmatpush.bf16.msra.mxu0 %v678
    %1027 = vmatpush.bf16.msra.mxu0 %v676
    %1028 = vmatpush.bf16.msra.mxu0 %v674
    %1029 = vmatmul.bf16.gmra.mxu0 %v87
    %v1030 = vpop.f32.mrf.mxu0
    %v1031 = vadd.f32 %v1018, %v1030
    %v1032 = vpop.f32.mrf.mxu0
    %1033 = vdwg.mxu0
    %1034 = vmatpush.bf16.msra.mxu0 %v704
    %1035 = vmatpush.bf16.msra.mxu0 %v702
    %1036 = vmatpush.bf16.msra.mxu0 %v700
    %1037 = vmatpush.bf16.msra.mxu0 %v698
    %1038 = vmatpush.bf16.msra.mxu0 %v696
    %1039 = vmatpush.bf16.msra.mxu0 %v694
    %1040 = vmatpush.bf16.msra.mxu0 %v692
    %1041 = vmatpush.bf16.msra.mxu0 %v690
    %1042 = vmatmul.bf16.gmra.mxu0 %v88
    %v1043 = vpop.f32.mrf.mxu0
    %v1044 = vadd.f32 %v1031, %v1043
    %v1045 = vpop.f32.mrf.mxu0
    %1046 = vdwg.mxu0
    %1047 = vmatpush.bf16.msra.mxu0 %v720
    %1048 = vmatpush.bf16.msra.mxu0 %v718
    %1049 = vmatpush.bf16.msra.mxu0 %v716
    %1050 = vmatpush.bf16.msra.mxu0 %v714
    %1051 = vmatpush.bf16.msra.mxu0 %v712
    %1052 = vmatpush.bf16.msra.mxu0 %v710
    %1053 = vmatpush.bf16.msra.mxu0 %v708
    %1054 = vmatpush.bf16.msra.mxu0 %v706
    %1055 = vmatmul.bf16.gmra.mxu0 %v89
    %v1056 = vpop.f32.mrf.mxu0
    %v1057 = vadd.f32 %v1044, %v1056
    %v1058 = vpop.f32.mrf.mxu0
    %1059 = vdwg.mxu0
    %1060 = vmatpush.bf16.msra.mxu0 %v736
    %1061 = vmatpush.bf16.msra.mxu0 %v734
    %1062 = vmatpush.bf16.msra.mxu0 %v732
    %1063 = vmatpush.bf16.msra.mxu0 %v730
    %1064 = vmatpush.bf16.msra.mxu0 %v728
    %1065 = vmatpush.bf16.msra.mxu0 %v726
    %1066 = vmatpush.bf16.msra.mxu0 %v724
    %1067 = vmatpush.bf16.msra.mxu0 %v722
    %1068 = vmatmul.bf16.gmra.mxu0 %v90
    %v1069 = vpop.f32.mrf.mxu0
    %v1070 = vadd.f32 %v1057, %v1069
    %v1071 = vpop.f32.mrf.mxu0
    %1072 = vdwg.mxu0
    %v1073 = vmax.f32 %v966, 0.0
    %v1074 = vmax.f32 %v1070, 0.0
    %v1075 = vpack.c.bf16 %v1073, %v1073
    %v1076 = vpack.c.bf16 %v1074, %v1074
    %v1077 = vld [vmem:[%s3] sm:$0xf]
    %v1078 = vld [vmem:[%s3 + $0x4] sm:$0xf]
    %v1079 = vld [vmem:[%s3 + $0x8] sm:$0xf]
    %v1080 = vld [vmem:[%s3 + $0xc] sm:$0xf]
    %v1081 = vld [vmem:[%s3 + $0x10] sm:$0xf]
    %v1082 = vld [vmem:[%s3 + $0x14] sm:$0xf]
    %v1083 = vld [vmem:[%s3 + $0x18] sm:$0xf]
    %v1084 = vld [vmem:[%s3 + $0x1c] sm:$0xf]
    %v1085 = vld [vmem:[%s3 + $0x20] sm:$0xf]
    %v1086 = vld [vmem:[%s3 + $0x24] sm:$0xf]
    %v1087 = vld [vmem:[%s3 + $0x28] sm:$0xf]
    %v1088 = vld [vmem:[%s3 + $0x2c] sm:$0xf]
    %v1089 = vld [vmem:[%s3 + $0x30] sm:$0xf]
    %v1090 = vld [vmem:[%s3 + $0x34] sm:$0xf]
    %v1091 = vld [vmem:[%s3 + $0x38] sm:$0xf]
    %v1092 = vld [vmem:[%s3 + $0x3c] sm:$0xf]
    %v1093 = vld [vmem:[%s3 + $0x40] sm:$0xf]
    %v1094 = vld [vmem:[%s3 + $0x44] sm:$0xf]
    %v1095 = vld [vmem:[%s3 + $0x48] sm:$0xf]
    %v1096 = vld [vmem:[%s3 + $0x4c] sm:$0xf]
    %v1097 = vld [vmem:[%s3 + $0x50] sm:$0xf]
    %v1098 = vld [vmem:[%s3 + $0x54] sm:$0xf]
    %v1099 = vld [vmem:[%s3 + $0x58] sm:$0xf]
    %v1100 = vld [vmem:[%s3 + $0x5c] sm:$0xf]
    %v1101 = vld [vmem:[%s3 + $0x60] sm:$0xf]
    %v1102 = vld [vmem:[%s3 + $0x64] sm:$0xf]
    %v1103 = vld [vmem:[%s3 + $0x68] sm:$0xf]
    %v1104 = vld [vmem:[%s3 + $0x6c] sm:$0xf]
    %v1105 = vld [vmem:[%s3 + $0x70] sm:$0xf]
    %v1106 = vld [vmem:[%s3 + $0x74] sm:$0xf]
    %v1107 = vld [vmem:[%s3 + $0x78] sm:$0xf]
    %v1108 = vld [vmem:[%s3 + $0x7c] sm:$0xf]
    %v1109 = vld [vmem:[%s4] sm:$0x1]
    %v1111 = vperm.slane %v1109, 0
    %v1145 = vunpack.c.l.b16 %v1077
    %v1146 = vunpack.c.l.b16 %v1078
    %v1147 = vunpack.c.l.b16 %v1079
    %v1148 = vunpack.c.l.b16 %v1080
    %v1149 = vunpack.c.l.b16 %v1081
    %v1150 = vunpack.c.l.b16 %v1082
    %v1151 = vunpack.c.l.b16 %v1083
    %v1152 = vunpack.c.l.b16 %v1084
    %v1153 = vunpack.c.l.b16 %v1085
    %v1154 = vunpack.c.l.b16 %v1086
    %v1155 = vunpack.c.l.b16 %v1087
    %v1156 = vunpack.c.l.b16 %v1088
    %v1157 = vunpack.c.l.b16 %v1089
    %v1158 = vunpack.c.l.b16 %v1090
    %v1159 = vunpack.c.l.b16 %v1091
    %v1160 = vunpack.c.l.b16 %v1092
    %v1161 = vunpack.c.l.b16 %v1093
    %v1162 = vunpack.c.l.b16 %v1094
    %v1163 = vunpack.c.l.b16 %v1095
    %v1164 = vunpack.c.l.b16 %v1096
    %v1165 = vunpack.c.l.b16 %v1097
    %v1166 = vunpack.c.l.b16 %v1098
    %v1167 = vunpack.c.l.b16 %v1099
    %v1168 = vunpack.c.l.b16 %v1100
    %v1169 = vunpack.c.l.b16 %v1101
    %v1170 = vunpack.c.l.b16 %v1102
    %v1171 = vunpack.c.l.b16 %v1103
    %v1172 = vunpack.c.l.b16 %v1104
    %v1173 = vunpack.c.l.b16 %v1105
    %v1174 = vunpack.c.l.b16 %v1106
    %v1175 = vunpack.c.l.b16 %v1107
    %v1176 = vunpack.c.l.b16 %v1108
    %v1177 = vpack.c.b16 %v1146, %v1145
    %v1178 = vpack.c.b16 %v1148, %v1147
    %v1179 = vpack.c.b16 %v1150, %v1149
    %v1180 = vpack.c.b16 %v1152, %v1151
    %v1181 = vpack.c.b16 %v1154, %v1153
    %v1182 = vpack.c.b16 %v1156, %v1155
    %v1183 = vpack.c.b16 %v1158, %v1157
    %v1184 = vpack.c.b16 %v1160, %v1159
    %v1185 = vpack.c.b16 %v1162, %v1161
    %v1186 = vpack.c.b16 %v1164, %v1163
    %v1187 = vpack.c.b16 %v1166, %v1165
    %v1188 = vpack.c.b16 %v1168, %v1167
    %v1189 = vpack.c.b16 %v1170, %v1169
    %v1190 = vpack.c.b16 %v1172, %v1171
    %v1191 = vpack.c.b16 %v1174, %v1173
    %v1192 = vpack.c.b16 %v1176, %v1175
    %1209 = vmatpush.bf16.msra.mxu0 %v1184
    %1210 = vmatpush.bf16.msra.mxu0 %v1183
    %1211 = vmatpush.bf16.msra.mxu0 %v1182
    %1212 = vmatpush.bf16.msra.mxu0 %v1181
    %1213 = vmatpush.bf16.msra.mxu0 %v1180
    %1214 = vmatpush.bf16.msra.mxu0 %v1179
    %1215 = vmatpush.bf16.msra.mxu0 %v1178
    %1216 = vmatpush.bf16.msra.mxu0 %v1177
    %1217 = vmatmul.bf16.gmra.mxu0 %v1075
    %v1218 = vpop.f32.mrf.mxu0
    %v1219 = vadd.f32 %v1111, %v1218
    %v1220 = vpop.f32.mrf.mxu0
    %1221 = vdwg.mxu0
    %1222 = vmatpush.bf16.msra.mxu0 %v1192
    %1223 = vmatpush.bf16.msra.mxu0 %v1191
    %1224 = vmatpush.bf16.msra.mxu0 %v1190
    %1225 = vmatpush.bf16.msra.mxu0 %v1189
    %1226 = vmatpush.bf16.msra.mxu0 %v1188
    %1227 = vmatpush.bf16.msra.mxu0 %v1187
    %1228 = vmatpush.bf16.msra.mxu0 %v1186
    %1229 = vmatpush.bf16.msra.mxu0 %v1185
    %1230 = vmatmul.bf16.gmra.mxu0 %v1076
    %v1231 = vpop.f32.mrf.mxu0
    %v1232 = vadd.f32 %v1219, %v1231
    %v1233 = vpop.f32.mrf.mxu0
    %1234 = vdwg.mxu0
    %v1235 = vpack.c.bf16 %v1232, %v1232
    %v1237 = vrot.slane %v1235, 3
    %vm1238 = vcmask 1040384
    %v1241 = vsel %vm1238, %v1235, %v1237
    %vm1242 = vcmask 1041409
    %v1243 = vsel %vm1242, %v1235, %v1237
    %v1245 = vrot.slane %v1243, 1
    %vm1246 = vcmask 1042434
    %v1247 = vsel %vm1246, %v1235, %v1237
    %v1249 = vrot.slane %v1247, 2
    %vm1250 = vcmask 1043459
    %v1251 = vsel %vm1250, %v1235, %v1237
    %v1253 = vrot.slane %v1251, 3
    %1258 = vst [vmem:[#allocation4] sm:$0x1] %v1241
    %1259 = vst [vmem:[#allocation4 + $0x1] sm:$0x1] %v1245
    %1260 = vst [vmem:[#allocation4 + $0x2] sm:$0x1] %v1249
    %1261 = vst [vmem:[#allocation4 + $0x3] sm:$0x1] %v1253
    // Predicated region
    $region26: #{mlp_forward.1} parent=1 // pred_check
      _
    $region27: #{mlp_forward.1} parent=1 // pred_check_branch
      %1263 = sbr.rel (0) target = $region29
    $region28: #{mlp_forward.1} parent=1 // pred_region
      // Predicated region
      $region30: #{mlp_forward.1} parent=28 // pred_check
        _
      $region31: #{mlp_forward.1} parent=28 // pred_check_branch
        %1265 = sbr.rel (0) target = $region33
      $region32: #{mlp_forward.1} parent=28 // pred_region
        // Predicated region
        $region34: #{mlp_forward.1} parent=32 // pred_check
          _
        $region35: #{mlp_forward.1} parent=32 // pred_check_branch
          %1267 = sbr.rel target = $region37
        $region36: #{mlp_forward.1} parent=32 // pred_region
          // Predicated region
          $region49: #{mlp_forward.1} parent=36 // pred_check
            _
          $region50: #{mlp_forward.1} parent=36 // pred_check_branch
            %1283 = sbr.rel (0) target = $region52
          $region51: #{mlp_forward.1} parent=36 // pred_region
            %s1285 = ssub.s32 2, 1
            loop: start=0, step=1, limit=1
            $region53: #{mlp_forward.1} parent=51 // loop_pre_header
              _
            $region54: #{mlp_forward.1} parent=51 // loop_header
              %s1287 = sphi 0, %s1291
              %p1288 = scmp.ge.s32.totalorder %s1287, 1
              %s1292 = sphi [#allocation4], [#allocation4]
              %s1293 = sphi %s5, %s5
            $region55: #{mlp_forward.1} parent=51 // loop_header_branch
              %1290 = sbr.rel (%p1288) target = $region59
            $region56: #{mlp_forward.1} parent=51 // loop_body
              %v1294 = vld [vmem:[%s1292] sm:%s1285]
              %1295 = vst [vmem:[%s1293] sm:%s1285] %v1294
            $region57: #{mlp_forward.1} parent=51 // loop_footer
              %s1291 = sadd.s32 1, %s1287
            $region58: #{mlp_forward.1} parent=51 // loop_footer_branch
              %1286 = sbr.rel target = $region54
            $region59: #{mlp_forward.1} parent=51 // loop_exit
              _
          $region52: #{mlp_forward.1} parent=36 // pred_fallthru
            _
        $region37: #{mlp_forward.1} parent=32 // pred_fallthru
          _
        // Predicated region
        $region38: #{mlp_forward.1} parent=32 // pred_check
          _
        $region39: #{mlp_forward.1} parent=32 // pred_check_branch
          %1269 = sbr.rel (0) target = $region41
        $region40: #{mlp_forward.1} parent=32 // pred_region
          %s1271 = ssub.s32 2, 1
          loop: start=0, step=1, limit=1
          $region42: #{mlp_forward.1} parent=40 // loop_pre_header
            _
          $region43: #{mlp_forward.1} parent=40 // loop_header
            %s1273 = sphi 0, %s1277
            %p1274 = scmp.ge.s32.totalorder %s1273, 1
            %s1278 = sphi [#allocation4], [#allocation4]
            %s1279 = sphi %s5, %s5
          $region44: #{mlp_forward.1} parent=40 // loop_header_branch
            %1276 = sbr.rel (%p1274) target = $region48
          $region45: #{mlp_forward.1} parent=40 // loop_body
            %v1280 = vld [vmem:[%s1278] sm:%s1271]
            %1281 = vst [vmem:[%s1279] sm:%s1271] %v1280
          $region46: #{mlp_forward.1} parent=40 // loop_footer
            %s1277 = sadd.s32 1, %s1273
          $region47: #{mlp_forward.1} parent=40 // loop_footer_branch
            %1272 = sbr.rel target = $region43
          $region48: #{mlp_forward.1} parent=40 // loop_exit
            _
        $region41: #{mlp_forward.1} parent=32 // pred_fallthru
          _
      $region33: #{mlp_forward.1} parent=28 // pred_fallthru
        _
      %1296 = vnop
    $region29: #{mlp_forward.1} parent=1 // pred_fallthru
      _
    // Predicated region
    $region60: #{mlp_forward.1} parent=1 // pred_check
      _
    $region61: #{mlp_forward.1} parent=1 // pred_check_branch
      %1298 = sbr.rel (0) target = $region63
    $region62: #{mlp_forward.1} parent=1 // pred_region
      _
    $region63: #{mlp_forward.1} parent=1 // pred_fallthru
      _
    %1299 = vsyncpa [#allocation3], 1

</llo_original>
